<compile_context>
chip_gen: v7x
topology: tpu7x:2x2x1
jax: 0.10.0
libtpu: 0.0.40
codegen_flags: <defaults>
</compile_context>

<pallas_src>
import functools
import math

import jax
import jax.numpy as jnp
from jax.experimental import pallas as pl
from jax.experimental.pallas import tpu as pltpu

PI = math.pi


def _vdiffusion_kernel(alpha_ref, beta_ref, x_ref, n_ref, w_ref, emb_ref,
                       out_ref, *, mxu_dtype):
    """One grid step: tb batch elements in native (tb, C, L) layout.

    alpha_ref/beta_ref: (tb, 1, 1) per-batch cos/sin(sigma*pi/2)
    x_ref, n_ref:       (tb, C, L) clean signal / gaussian noise
    w_ref:              (C, C)     pointwise-conv weight (VMEM resident)
    emb_ref:            (tb, C, 1) folded bias: conv_bias + sig_w*sigma + sig_b
    out_ref:            (tb, L)    per-(batch, position) partial SSE (sum over C)
    """
    alpha = alpha_ref[...]                                   # (tb, 1, 1) f32
    beta = beta_ref[...]                                     # (tb, 1, 1) f32
    x = x_ref[...]                                           # (tb, C, L) f32
    nz = n_ref[...]                                          # (tb, C, L) f32

    # v-diffusion mixing: all elementwise math kept f32 (v5e has no bf16 VPU)
    x_noisy = alpha * x + beta * nz
    v_target = alpha * nz - beta * x

    # Synthetic net_t stand-in: pointwise Conv1d(C->C, k=1) == batched channel
    # matmul on the MXU (narrow dtype only at the matmul boundary, f32 acc)
    # plus a learned sigma embedding already folded into emb_ref.
    # TODO(synk): net_t is a user-supplied nn.Module in the PyTorch model.
    tb, C, _ = x_ref.shape
    w_b = jnp.broadcast_to(w_ref[...].astype(mxu_dtype)[None], (tb, C, C))
    v_lin = jnp.einsum('toc,tcl->tol', w_b, x_noisy.astype(mxu_dtype),
                       preferred_element_type=jnp.float32)   # (tb, C, L)
    v_pred = v_lin + emb_ref[...]                            # + (tb, C, 1)

    d = v_pred - v_target
    # Reduce only the channel (sublane) axis here; the single cross-lane
    # reduction + mean normalization happen once in the wrapper.
    out_ref[...] = jnp.sum(d * d, axis=1)                    # (tb, L)


def _default_vmem_limit_bytes():
    """Generation-aware VMEM budget: ~48 MiB on v7x (64 MiB physical per TC),
    ~112 MiB on v5e/v6e (128 MiB physical)."""
    try:
        cap = pltpu.get_tpu_info().vmem_capacity_bytes
    except Exception:
        cap = 64 << 20                       # conservative: v7x per-TC VMEM
    return int(min(max(cap - (16 << 20), 32 << 20), 112 << 20))


def _pick_tb(B, C, L, vmem_limit_bytes):
    """Largest batch tile whose double-buffered blocks fit the VMEM budget,
    targeting multi-MiB input blocks (HBM roofline) and >= 2 grid steps
    (v7x has 2 TensorCores sharing a parallel grid axis)."""
    stream_bytes = C * L * 4                 # one f32 stream, one batch element
    budget = int(vmem_limit_bytes * 0.75)    # headroom for scratch/temporaries
    target = 4 << 20                         # aim for multi-MiB input blocks
    divisors = [d for d in range(1, B + 1) if B % d == 0]
    tb = 1
    for cand in divisors:
        # 2 input streams (x, noise) x 2 pipeline buffers + 2 output buffers
        need = 4 * cand * stream_bytes + 8 * cand * L * 4 + (1 << 20)
        if need > budget:
            break
        tb = cand
        if cand * stream_bytes >= target and B // cand >= 2:
            break
    if tb == B and B > 1:                    # avoid single-step grids
        tb = max(d for d in divisors if d < B)
    return tb


def diffusion_loss(x, noise, sigmas, w, bias, sig_w, sig_b, *, tb=None,
                   mxu_dtype=jnp.bfloat16, vmem_limit_bytes=None):
    """x, noise: (B, C, L) f32; sigmas: (B,) f32. Returns scalar MSE loss."""
    B, C, L = x.shape
    if vmem_limit_bytes is None:
        vmem_limit_bytes = _default_vmem_limit_bytes()
    if tb is None:
        tb = _pick_tb(B, C, L, vmem_limit_bytes)
    assert B % tb == 0, "batch tile must divide B"
    nb = B // tb
    # Blocks span full C and L so they are always layout-legal; L a multiple
    # of 128 keeps lane-dense (unmasked) vector stores.

    # Tiny per-batch side inputs precomputed in the wrapper (negligible HBM
    # traffic; removes per-step cos/sin and one full (C, L) VPU add):
    ang = sigmas.astype(jnp.float32) * (PI / 2.0)
    alpha = jnp.cos(ang).reshape(B, 1, 1)
    beta = jnp.sin(ang).reshape(B, 1, 1)
    # Fold conv bias + sigma embedding into one (B, C, 1) additive term.
    emb = sig_w[None, :, :] * sigmas[:, None, None] + (bias + sig_b)[None, :, :]

    kernel = functools.partial(_vdiffusion_kernel, mxu_dtype=mxu_dtype)
    partials = pl.pallas_call(
        kernel,
        out_shape=jax.ShapeDtypeStruct((nb, tb, L), jnp.float32),
        grid_spec=pltpu.PrefetchScalarGridSpec(
            num_scalar_prefetch=0,
            grid=(nb,),
            in_specs=[
                pl.BlockSpec((tb, 1, 1), lambda j: (j, 0, 0)),   # alpha
                pl.BlockSpec((tb, 1, 1), lambda j: (j, 0, 0)),   # beta
                pl.BlockSpec((tb, C, L), lambda j: (j, 0, 0)),   # x (native)
                pl.BlockSpec((tb, C, L), lambda j: (j, 0, 0)),   # noise
                pl.BlockSpec((C, C), lambda j: (0, 0)),          # W (resident)
                pl.BlockSpec((tb, C, 1), lambda j: (j, 0, 0)),   # folded bias
            ],
            out_specs=pl.BlockSpec((pl.Squeezed(), tb, L), lambda j: (j, 0, 0)),
        ),
        compiler_params=pltpu.CompilerParams(
            dimension_semantics=("parallel",),                   # megacore-able
            vmem_limit_bytes=int(vmem_limit_bytes),
        ),
    )(alpha, beta, x, noise, w, emb)

    # Single cross-lane reduction + constant multiply (mean over B*C*L).
    return jnp.sum(partials) * (1.0 / float(B * C * L))


def reference_loss(x, noise, sigmas, w, bias, sig_w, sig_b):
    alpha = jnp.cos(sigmas * PI / 2.0)[:, None, None]
    beta = jnp.sin(sigmas * PI / 2.0)[:, None, None]
    x_noisy = alpha * x + beta * noise
    v_target = alpha * noise - beta * x
    # same narrow-in / f32-acc matmul policy as the kernel's stand-in net
    v_lin = jnp.einsum('oc,bcl->bol',
                       w.astype(jnp.bfloat16), x_noisy.astype(jnp.bfloat16),
                       preferred_element_type=jnp.float32)
    emb = sig_w[None] * sigmas[:, None, None] + sig_b[None]
    v_pred = v_lin + bias[None] + emb
    return jnp.mean((v_pred - v_target) ** 2)


if __name__ == "__main__":
    B, C, L = 4, 8, 128   # small demo shapes; L multiple of 128 -> lane-dense

    key = jax.random.PRNGKey(0)
    kx, kn, ks, kw, kb, ksw, ksb = jax.random.split(key, 7)

    x = jax.random.normal(kx, (B, C, L), jnp.float32)
    # torch RNG (uniform sigmas / randn noise) reproduced deterministically:
    noise = jax.random.normal(kn, (B, C, L), jnp.float32)
    sigmas = jax.random.uniform(ks, (B,), jnp.float32)

    # pointwise Conv1d(C, C, 1): kaiming_normal_ weight, default-uniform bias
    fan_in = C  # in_channels * kernel_size
    w = jax.random.normal(kw, (C, C), jnp.float32) * math.sqrt(2.0 / fan_in)
    bound = 1.0 / math.sqrt(fan_in)
    bias = jax.random.uniform(kb, (C, 1), jnp.float32, -bound, bound)
    sig_w = jax.random.normal(ksw, (C, 1), jnp.float32) * 0.1
    sig_b = jax.random.normal(ksb, (C, 1), jnp.float32) * 0.1

    loss = diffusion_loss(x, noise, sigmas, w, bias, sig_w, sig_b)
    jax.block_until_ready(loss)

    ref = reference_loss(x, noise, sigmas, w, bias, sig_w, sig_b)
    assert jnp.allclose(loss, ref, rtol=5e-3, atol=1e-4), (loss, ref)

    print("KERNEL_OK")
</pallas_src>

<mosaic_0001>
module attributes {stable_mosaic.version = 11 : i64} {
  func.func @_vdiffusion_kernel(%arg0: i32, %arg1: memref<2x1x1xf32, #tpu.memory_space<vmem>>, %arg2: memref<2x1x1xf32, #tpu.memory_space<vmem>>, %arg3: memref<2x8x128xf32, #tpu.memory_space<vmem>>, %arg4: memref<2x8x128xf32, #tpu.memory_space<vmem>>, %arg5: memref<8x8xf32, #tpu.memory_space<vmem>>, %arg6: memref<2x8x1xf32, #tpu.memory_space<vmem>>, %arg7: memref<1x2x128xf32, #tpu.memory_space<vmem>>) attributes {dimension_semantics = [#tpu.dimension_semantics<parallel>], iteration_bounds = array<i64: 2>, scalar_prefetch = 0 : i64, scratch_operands = 0 : i64, tpu.core_type = #tpu.core_type<tc>, window_params = [{transform_indices = @transform_0, window_bounds = array<i64: 2, 1, 1>}, {transform_indices = @transform_1, window_bounds = array<i64: 2, 1, 1>}, {transform_indices = @transform_2, window_bounds = array<i64: 2, 8, 128>}, {transform_indices = @transform_3, window_bounds = array<i64: 2, 8, 128>}, {pipeline_mode = #tpu.pipeline_mode<synchronous>, transform_indices = @transform_4, window_bounds = array<i64: 8, 8>}, {transform_indices = @transform_5, window_bounds = array<i64: 2, 8, 1>}, {transform_indices = @transform_6, window_bounds = array<i64: 1, 2, 128>}]} {
    %c0 = arith.constant 0 : index
    %c0_0 = arith.constant 0 : index
    %c0_1 = arith.constant 0 : index
    %0 = vector.load %arg1[%c0, %c0_0, %c0_1] : memref<2x1x1xf32, #tpu.memory_space<vmem>>, vector<2x1x1xf32>
    %c0_2 = arith.constant 0 : index
    %c0_3 = arith.constant 0 : index
    %c0_4 = arith.constant 0 : index
    %1 = vector.load %arg2[%c0_2, %c0_3, %c0_4] : memref<2x1x1xf32, #tpu.memory_space<vmem>>, vector<2x1x1xf32>
    %c0_5 = arith.constant 0 : index
    %c0_6 = arith.constant 0 : index
    %c0_7 = arith.constant 0 : index
    %2 = vector.load %arg3[%c0_5, %c0_6, %c0_7] : memref<2x8x128xf32, #tpu.memory_space<vmem>>, vector<2x8x128xf32>
    %c0_8 = arith.constant 0 : index
    %c0_9 = arith.constant 0 : index
    %c0_10 = arith.constant 0 : index
    %3 = vector.load %arg4[%c0_8, %c0_9, %c0_10] : memref<2x8x128xf32, #tpu.memory_space<vmem>>, vector<2x8x128xf32>
    %4 = vector.broadcast %0 : vector<2x1x1xf32> to vector<2x8x128xf32>
    %5 = arith.mulf %4, %2 : vector<2x8x128xf32>
    %6 = vector.broadcast %1 : vector<2x1x1xf32> to vector<2x8x128xf32>
    %7 = arith.mulf %6, %3 : vector<2x8x128xf32>
    %8 = arith.addf %5, %7 : vector<2x8x128xf32>
    %9 = vector.broadcast %0 : vector<2x1x1xf32> to vector<2x8x128xf32>
    %10 = arith.mulf %9, %3 : vector<2x8x128xf32>
    %11 = vector.broadcast %1 : vector<2x1x1xf32> to vector<2x8x128xf32>
    %12 = arith.mulf %11, %2 : vector<2x8x128xf32>
    %13 = arith.subf %10, %12 : vector<2x8x128xf32>
    %c0_11 = arith.constant 0 : index
    %c0_12 = arith.constant 0 : index
    %14 = vector.load %arg5[%c0_11, %c0_12] : memref<8x8xf32, #tpu.memory_space<vmem>>, vector<8x8xf32>
    %15 = arith.truncf %14 : vector<8x8xf32> to vector<8x8xbf16>
    %16 = vector.shape_cast %15 : vector<8x8xbf16> to vector<1x8x8xbf16>
    %17 = vector.shape_cast %16 : vector<1x8x8xbf16> to vector<1x8x8xbf16>
    %18 = vector.broadcast %17 : vector<1x8x8xbf16> to vector<2x8x8xbf16>
    %19 = arith.truncf %8 : vector<2x8x128xf32> to vector<2x8x128xbf16>
    "tpu.trace_start"() <{level = 10 : i32, message = "toc,tcl->tol"}> : () -> ()
    %cst = arith.constant dense<0.000000e+00> : vector<2x8x128xf32>
    %20 = tpu.matmul %18, %19, %cst {dimension_numbers = #tpu.dot_dimension_numbers<[2], [1], [1], [2], [0, 0, 0, 1, 1, 2], [0], [0]>} : vector<2x8x8xbf16>, vector<2x8x128xbf16>, vector<2x8x128xf32> -> vector<2x8x128xf32>
    "tpu.trace_stop"() : () -> ()
    %c0_13 = arith.constant 0 : index
    %c0_14 = arith.constant 0 : index
    %c0_15 = arith.constant 0 : index
    %21 = vector.load %arg6[%c0_13, %c0_14, %c0_15] : memref<2x8x1xf32, #tpu.memory_space<vmem>>, vector<2x8x1xf32>
    %22 = vector.broadcast %21 : vector<2x8x1xf32> to vector<2x8x128xf32>
    %23 = arith.addf %20, %22 : vector<2x8x128xf32>
    %24 = arith.subf %23, %13 : vector<2x8x128xf32>
    %25 = arith.mulf %24, %24 : vector<2x8x128xf32>
    %cst_16 = arith.constant dense<0.000000e+00> : vector<2x128xf32>
    %26 = vector.multi_reduction <add>, %25, %cst_16 [1] : vector<2x8x128xf32> to vector<2x128xf32>
    %c0_17 = arith.constant 0 : index
    %c0_18 = arith.constant 0 : index
    %c0_19 = arith.constant 0 : index
    %27 = vector.load %arg7[%c0_17, %c0_18, %c0_19] : memref<1x2x128xf32, #tpu.memory_space<vmem>>, vector<1x2x128xf32>
    %28 = vector.shape_cast %27 : vector<1x2x128xf32> to vector<2x128xf32>
    %29 = vector.shape_cast %26 : vector<2x128xf32> to vector<1x2x128xf32>
    tpu.vector_store %arg7[%c0_17, %c0_18, %c0_19], %29 {strides = array<i32>} : memref<1x2x128xf32, #tpu.memory_space<vmem>>, vector<1x2x128xf32>,
    return
  }
  func.func @transform_0(%arg0: i32) -> (i32, i32, i32) {
    %c0_i32 = arith.constant 0 : i32
    %c0_i32_0 = arith.constant 0 : i32
    %c0_i32_1 = arith.constant 0 : i32
    return %arg0, %c0_i32, %c0_i32_0 : i32, i32, i32
  }
  func.func @transform_1(%arg0: i32) -> (i32, i32, i32) {
    %c0_i32 = arith.constant 0 : i32
    %c0_i32_0 = arith.constant 0 : i32
    %c0_i32_1 = arith.constant 0 : i32
    return %arg0, %c0_i32, %c0_i32_0 : i32, i32, i32
  }
  func.func @transform_2(%arg0: i32) -> (i32, i32, i32) {
    %c0_i32 = arith.constant 0 : i32
    %c0_i32_0 = arith.constant 0 : i32
    %c0_i32_1 = arith.constant 0 : i32
    return %arg0, %c0_i32, %c0_i32_0 : i32, i32, i32
  }
  func.func @transform_3(%arg0: i32) -> (i32, i32, i32) {
    %c0_i32 = arith.constant 0 : i32
    %c0_i32_0 = arith.constant 0 : i32
    %c0_i32_1 = arith.constant 0 : i32
    return %arg0, %c0_i32, %c0_i32_0 : i32, i32, i32
  }
  func.func @transform_4(%arg0: i32) -> (i32, i32) {
    %c0_i32 = arith.constant 0 : i32
    %c0_i32_0 = arith.constant 0 : i32
    %c0_i32_1 = arith.constant 0 : i32
    return %c0_i32, %c0_i32_0 : i32, i32
  }
  func.func @transform_5(%arg0: i32) -> (i32, i32, i32) {
    %c0_i32 = arith.constant 0 : i32
    %c0_i32_0 = arith.constant 0 : i32
    %c0_i32_1 = arith.constant 0 : i32
    return %arg0, %c0_i32, %c0_i32_0 : i32, i32, i32
  }
  func.func @transform_6(%arg0: i32) -> (i32, i32, i32) {
    %c0_i32 = arith.constant 0 : i32
    %c0_i32_0 = arith.constant 0 : i32
    %c0_i32_1 = arith.constant 0 : i32
    return %arg0, %c0_i32, %c0_i32_0 : i32, i32, i32
  }
}

</mosaic_0001>

<llo_original>
// kernel: tpu_custom_call.1
$region0: #{tpu_custom_call.1}
  #allocation0 [shape = 'u32[]', space=smem, size = 0x4, offset = 0x4, fixed_abs, tag = 'smem constant byte address 0x4 - core index']
  #allocation1 [shape = 'u32[144,128]{1,0:T(1,128)}', space=vmem, size = 0x12000, scoped, tag = 'internal scratch']
  %s0 = inlined_call_operand.vmem [shape: f32[4,1,1], index: 0, kind: input, shape index: {}]
  %s1 = inlined_call_operand.vmem [shape: f32[4,1,1], index: 1, kind: input, shape index: {}]
  %s2 = inlined_call_operand.vmem [shape: f32[4,8,128], index: 2, kind: input, shape index: {}]
  %s3 = inlined_call_operand.hbm [shape: f32[4,8,128], index: 3, kind: input, shape index: {}]
  %s4 = inlined_call_operand.vmem [shape: f32[8,8], index: 4, kind: input, shape index: {}]
  %s5 = inlined_call_operand.vmem [shape: f32[4,8,1], index: 5, kind: input, shape index: {}]
  %s6 = inlined_call_operand.hbm [shape: f32[2,2,128], index: 6, kind: output, shape index: {}]
  %s7 = sld [smem:[#allocation0]]
  $region61: #{tpu_custom_call.1} parent=0
    _
  %s9 = ssub.s32 1, %s7
  %s10 = scalar_select 0, %s9, %s7
  $region1: #{tpu_custom_call.1} parent=0
    #allocation2 [shape = 'u8[16384]{0}', space=vmem, size = 0x4000, scoped, tag = 'input window, operand 3']
    #allocation3 [shape = 's32[2]{0}', space=sflag, size = 0x8, scoped, tag = 'scoped memory for tpu_custom_call.1']
    #allocation4 [shape = 's32[2]{0}', space=sflag, size = 0x8, scoped, tag = 'scoped memory for tpu_custom_call.1']
    #allocation5 [shape = 'u8[2048]{0}', space=vmem, size = 0x800, scoped, tag = 'output window, operand 0']
    %11 = vsyncpa [#allocation3], 0
    %s12 = scalar_lea.sflag [#allocation3], 1
    %13 = vsyncpa %s12, 0
    %14 = vsyncpa [#allocation4], 0
    %s15 = scalar_lea.sflag [#allocation4], 1
    %16 = vsyncpa %s15, 0
    loop: start=0, step=1, limit=4
    $region2: #{tpu_custom_call.1} parent=1 // loop_pre_header
      _
    $region3: #{tpu_custom_call.1} parent=1 // loop_header
      %s18 = sphi 0, %s22
      %p19 = scmp.ge.s32.totalorder %s18, 4
      %s28 = sphi 0, %s30
      %s31 = sphi 0, %s28
      %s32 = sphi 0, %s31
      %s48 = sphi 0, %s32
      %s54 = sphi 0, %s56
      %s57 = sphi 0, %s54
      %s58 = sphi 0, %s57
      %s74 = sphi 0, %s58
      %s80 = sphi 0, %s82
      %s83 = sphi 0, %s80
      %s84 = sphi 0, %s83
      %s100 = sphi 0, %s84
      %s106 = sphi 0, %s108
      %s109 = sphi 0, %s106
      %s110 = sphi 0, %s109
      %s126 = sphi 0, %s110
      %s130 = sphi 0, %s130
      %s132 = sphi 0, %s130
      %s133 = sphi 0, %s132
      %s147 = sphi 0, %s133
      %s153 = sphi 0, %s155
      %s156 = sphi 0, %s153
      %s157 = sphi 0, %s156
      %s173 = sphi 0, %s157
      %s179 = sphi 0, %s181
      %s182 = sphi 0, %s179
      %s183 = sphi 0, %s182
      %s199 = sphi 0, %s183
    $region4: #{tpu_custom_call.1} parent=1 // loop_header_branch
      %21 = sbr.rel (%p19) target = $region8
    $region5: #{tpu_custom_call.1} parent=1 // loop_body
      %s23 = ssub.s32 %s18, 1
      %s24 = ssub.s32 %s18, 2
      %s25 = sadd.s32 %s18, 1
      %s26 = ssub.s32 %s18, %s25
      %p27 = scmp.eq.s32.totalorder %s26, 0
      %s29 = sadd.s32 %s28, 1
      %s30 = scalar_select %p27, %s28, %s29
      %p33 = pneg %p27
      %p34 = scmp.eq.s32.totalorder %s18, 1
      %p35 = por %p33, %p34
      %p36 = scmp.ne.s32.totalorder %s28, %s31
      %p37 = scmp.eq.s32.totalorder %s18, 0
      %p38 = por %p36, %p37
      %p39 = scmp.ne.s32.totalorder %s28, %s31
      %p40 = scmp.eq.s32.totalorder %s23, 1
      %p41 = por %p39, %p40
      %p42 = scmp.ne.s32.totalorder %s31, %s32
      %p43 = scmp.eq.s32.totalorder %s23, 0
      %p44 = por %p42, %p43
      %p45 = scmp.ne.s32.totalorder %s31, %s32
      %p46 = scmp.eq.s32.totalorder %s24, 1
      %p47 = por %p45, %p46
      %p49 = scmp.ne.s32.totalorder %s32, %s48
      %p50 = scmp.eq.s32.totalorder %s24, 0
      %p51 = por %p49, %p50
      %s52 = ssub.s32 %s18, %s25
      %p53 = scmp.eq.s32.totalorder %s52, 0
      %s55 = sadd.s32 %s54, 1
      %s56 = scalar_select %p53, %s54, %s55
      %p59 = pneg %p53
      %p60 = scmp.eq.s32.totalorder %s18, 1
      %p61 = por %p59, %p60
      %p62 = scmp.ne.s32.totalorder %s54, %s57
      %p63 = scmp.eq.s32.totalorder %s18, 0
      %p64 = por %p62, %p63
      %p65 = scmp.ne.s32.totalorder %s54, %s57
      %p66 = scmp.eq.s32.totalorder %s23, 1
      %p67 = por %p65, %p66
      %p68 = scmp.ne.s32.totalorder %s57, %s58
      %p69 = scmp.eq.s32.totalorder %s23, 0
      %p70 = por %p68, %p69
      %p71 = scmp.ne.s32.totalorder %s57, %s58
      %p72 = scmp.eq.s32.totalorder %s24, 1
      %p73 = por %p71, %p72
      %p75 = scmp.ne.s32.totalorder %s58, %s74
      %p76 = scmp.eq.s32.totalorder %s24, 0
      %p77 = por %p75, %p76
      %s78 = ssub.s32 %s18, %s25
      %p79 = scmp.eq.s32.totalorder %s78, 0
      %s81 = sadd.s32 %s80, 1
      %s82 = scalar_select %p79, %s80, %s81
      %p85 = pneg %p79
      %p86 = scmp.eq.s32.totalorder %s18, 1
      %p87 = por %p85, %p86
      %p88 = scmp.ne.s32.totalorder %s80, %s83
      %p89 = scmp.eq.s32.totalorder %s18, 0
      %p90 = por %p88, %p89
      %p91 = scmp.ne.s32.totalorder %s80, %s83
      %p92 = scmp.eq.s32.totalorder %s23, 1
      %p93 = por %p91, %p92
      %p94 = scmp.ne.s32.totalorder %s83, %s84
      %p95 = scmp.eq.s32.totalorder %s23, 0
      %p96 = por %p94, %p95
      %p97 = scmp.ne.s32.totalorder %s83, %s84
      %p98 = scmp.eq.s32.totalorder %s24, 1
      %p99 = por %p97, %p98
      %p101 = scmp.ne.s32.totalorder %s84, %s100
      %p102 = scmp.eq.s32.totalorder %s24, 0
      %p103 = por %p101, %p102
      %s104 = ssub.s32 %s18, %s25
      %p105 = scmp.eq.s32.totalorder %s104, 0
      %s107 = sadd.s32 %s106, 1
      %s108 = scalar_select %p105, %s106, %s107
      %p111 = pneg %p105
      %p112 = scmp.eq.s32.totalorder %s18, 1
      %p113 = por %p111, %p112
      %p114 = scmp.ne.s32.totalorder %s106, %s109
      %p115 = scmp.eq.s32.totalorder %s18, 0
      %p116 = por %p114, %p115
      %p117 = scmp.ne.s32.totalorder %s106, %s109
      %p118 = scmp.eq.s32.totalorder %s23, 1
      %p119 = por %p117, %p118
      %p120 = scmp.ne.s32.totalorder %s109, %s110
      %p121 = scmp.eq.s32.totalorder %s23, 0
      %p122 = por %p120, %p121
      %p123 = scmp.ne.s32.totalorder %s109, %s110
      %p124 = scmp.eq.s32.totalorder %s24, 1
      %p125 = por %p123, %p124
      %p127 = scmp.ne.s32.totalorder %s110, %s126
      %p128 = scmp.eq.s32.totalorder %s24, 0
      %p129 = por %p127, %p128
      %s131 = sadd.s32 %s130, 1
      %p134 = scmp.eq.s32.totalorder %s18, 1
      %p135 = scmp.ne.s32.totalorder %s130, %s132
      %p136 = scmp.eq.s32.totalorder %s18, 0
      %p137 = por %p135, %p136
      %p138 = scmp.ne.s32.totalorder %s130, %s132
      %p139 = scmp.eq.s32.totalorder %s23, 1
      %p140 = por %p138, %p139
      %p141 = scmp.ne.s32.totalorder %s132, %s133
      %p142 = scmp.eq.s32.totalorder %s23, 0
      %p143 = por %p141, %p142
      %p144 = scmp.ne.s32.totalorder %s132, %s133
      %p145 = scmp.eq.s32.totalorder %s24, 1
      %p146 = por %p144, %p145
      %p148 = scmp.ne.s32.totalorder %s133, %s147
      %p149 = scmp.eq.s32.totalorder %s24, 0
      %p150 = por %p148, %p149
      %s151 = ssub.s32 %s18, %s25
      %p152 = scmp.eq.s32.totalorder %s151, 0
      %s154 = sadd.s32 %s153, 1
      %s155 = scalar_select %p152, %s153, %s154
      %p158 = pneg %p152
      %p159 = scmp.eq.s32.totalorder %s18, 1
      %p160 = por %p158, %p159
      %p161 = scmp.ne.s32.totalorder %s153, %s156
      %p162 = scmp.eq.s32.totalorder %s18, 0
      %p163 = por %p161, %p162
      %p164 = scmp.ne.s32.totalorder %s153, %s156
      %p165 = scmp.eq.s32.totalorder %s23, 1
      %p166 = por %p164, %p165
      %p167 = scmp.ne.s32.totalorder %s156, %s157
      %p168 = scmp.eq.s32.totalorder %s23, 0
      %p169 = por %p167, %p168
      %p170 = scmp.ne.s32.totalorder %s156, %s157
      %p171 = scmp.eq.s32.totalorder %s24, 1
      %p172 = por %p170, %p171
      %p174 = scmp.ne.s32.totalorder %s157, %s173
      %p175 = scmp.eq.s32.totalorder %s24, 0
      %p176 = por %p174, %p175
      %s177 = ssub.s32 %s18, %s25
      %p178 = scmp.eq.s32.totalorder %s177, 0
      %s180 = sadd.s32 %s179, 1
      %s181 = scalar_select %p178, %s179, %s180
      %p184 = pneg %p178
      %p185 = scmp.eq.s32.totalorder %s18, 1
      %p186 = por %p184, %p185
      %p187 = scmp.ne.s32.totalorder %s179, %s182
      %p188 = scmp.eq.s32.totalorder %s18, 0
      %p189 = por %p187, %p188
      %p190 = scmp.ne.s32.totalorder %s179, %s182
      %p191 = scmp.eq.s32.totalorder %s23, 1
      %p192 = por %p190, %p191
      %p193 = scmp.ne.s32.totalorder %s182, %s183
      %p194 = scmp.eq.s32.totalorder %s23, 0
      %p195 = por %p193, %p194
      %p196 = scmp.ne.s32.totalorder %s182, %s183
      %p197 = scmp.eq.s32.totalorder %s24, 1
      %p198 = por %p196, %p197
      %p200 = scmp.ne.s32.totalorder %s183, %s199
      %p201 = scmp.eq.s32.totalorder %s24, 0
      %p202 = por %p200, %p201
      %p203 = scmp.le.s32.totalorder 1, %s18
      %p204 = scmp.lt.s32.totalorder %s18, 3
      %p205 = pnand %p203, %p204
      %p206 = pneg %p205
      // Predicated region
      $region9: #{tpu_custom_call.1} parent=5 // pred_check
        _
      $region10: #{tpu_custom_call.1} parent=5 // pred_check_branch
        %208 = sbr.rel (%p205) target = $region12
      $region11: #{tpu_custom_call.1} parent=5 // pred_region
        %s209 = ssub.s32 %s18, 1
        // Predicated region
        $region13: #{tpu_custom_call.1} parent=11 // pred_check
          %p210 = pneg %p143
        $region14: #{tpu_custom_call.1} parent=11 // pred_check_branch
          %212 = sbr.rel (%p210) target = $region16
        $region15: #{tpu_custom_call.1} parent=11 // pred_region
          _
        $region16: #{tpu_custom_call.1} parent=11 // pred_fallthru
          _
      $region12: #{tpu_custom_call.1} parent=5 // pred_fallthru
        _
      %p213 = scmp.lt.s32.totalorder %s18, 2
      // Predicated region
      $region17: #{tpu_custom_call.1} parent=5 // pred_check
        %p214 = pneg %p213
      $region18: #{tpu_custom_call.1} parent=5 // pred_check_branch
        %216 = sbr.rel (%p214) target = $region20
      $region19: #{tpu_custom_call.1} parent=5 // pred_region
        // Predicated region
        $region21: #{tpu_custom_call.1} parent=19 // pred_check
          %p217 = pneg %p38
        $region22: #{tpu_custom_call.1} parent=19 // pred_check_branch
          %219 = sbr.rel (%p217) target = $region24
        $region23: #{tpu_custom_call.1} parent=19 // pred_region
          %s220 = smul.u32 2, %s18
          %p221 = scmp.lt.s32.totalorder %s220, 3
          %s222 = scalar_select %p221, %s220, 3
          %s223 = scalar_lea.vmem %s0, %s222
          %s224 = smul.u32 2, %s18
        $region24: #{tpu_custom_call.1} parent=19 // pred_fallthru
          _
        // Predicated region
        $region25: #{tpu_custom_call.1} parent=19 // pred_check
          %p225 = pneg %p64
        $region26: #{tpu_custom_call.1} parent=19 // pred_check_branch
          %227 = sbr.rel (%p225) target = $region28
        $region27: #{tpu_custom_call.1} parent=19 // pred_region
          %s228 = smul.u32 2, %s18
          %p229 = scmp.lt.s32.totalorder %s228, 3
          %s230 = scalar_select %p229, %s228, 3
          %s231 = scalar_lea.vmem %s1, %s230
          %s232 = smul.u32 2, %s18
        $region28: #{tpu_custom_call.1} parent=19 // pred_fallthru
          _
        // Predicated region
        $region29: #{tpu_custom_call.1} parent=19 // pred_check
          %p233 = pneg %p90
        $region30: #{tpu_custom_call.1} parent=19 // pred_check_branch
          %235 = sbr.rel (%p233) target = $region32
        $region31: #{tpu_custom_call.1} parent=19 // pred_region
          %s236 = smul.u32 2, %s18
          %p237 = scmp.lt.s32.totalorder %s236, 3
          %s238 = scalar_select %p237, %s236, 3
          %s239 = smul.addr %s238, 8
          %s240 = scalar_lea.vmem %s2, %s239
          %s241 = smul.u32 2, %s18
        $region32: #{tpu_custom_call.1} parent=19 // pred_fallthru
          _
        // Predicated region
        $region33: #{tpu_custom_call.1} parent=19 // pred_check
          %p242 = pneg %p116
        $region34: #{tpu_custom_call.1} parent=19 // pred_check_branch
          %244 = sbr.rel (%p242) target = $region36
        $region35: #{tpu_custom_call.1} parent=19 // pred_region
          %s245 = sand.u32 %s106, 1
          %s246 = scalar_lea.sflag [#allocation3], %s245
          %s247 = sand.u32 %s106, 1
          %s248 = smul.addr %s247, 16
          %s249 = scalar_lea.vmem [#allocation2], %s248
          %s250 = smul.u32 2, %s18
          %s252 = ssub.s32 256, 256
          %253 = vsyncadd %s246, %s252
          %s254 = smul.addr %s250, 128
          %s255 = scalar_lea.hbm %s3, %s254
          %s256 = sshll.u32 %s249, 4
          %s257 = int_to_ptr.vmem [resolvable:$true] %s256
          %262 = dma.hbm_to_vmem [thread:$0]  %s255, 256, %s257, %s246, 128, 128, 8
        $region36: #{tpu_custom_call.1} parent=19 // pred_fallthru
          _
        // Predicated region
        $region37: #{tpu_custom_call.1} parent=19 // pred_check
          %p263 = pneg %p163
        $region38: #{tpu_custom_call.1} parent=19 // pred_check_branch
          %265 = sbr.rel (%p263) target = $region40
        $region39: #{tpu_custom_call.1} parent=19 // pred_region
          %s266 = smul.u32 2, %s18
          %p267 = scmp.lt.s32.totalorder %s266, 3
          %s268 = scalar_select %p267, %s266, 3
          %s269 = smul.addr %s268, 8
          %s270 = scalar_lea.vmem %s5, %s269
          %s271 = smul.u32 2, %s18
        $region40: #{tpu_custom_call.1} parent=19 // pred_fallthru
          _
      $region20: #{tpu_custom_call.1} parent=5 // pred_fallthru
        _
      %p272 = scmp.le.s32.totalorder 1, %s18
      %p273 = scmp.lt.s32.totalorder %s18, 3
      %p274 = pnand %p272, %p273
      %p275 = pneg %p274
      // Predicated region
      $region41: #{tpu_custom_call.1} parent=5 // pred_check
        _
      $region42: #{tpu_custom_call.1} parent=5 // pred_check_branch
        %277 = sbr.rel (%p274) target = $region44
      $region43: #{tpu_custom_call.1} parent=5 // pred_region
        %s278 = ssub.s32 %s18, 1
        %s279 = sand.u32 %s109, 1
        %s280 = scalar_lea.sflag [#allocation3], %s279
        %s281 = sand.u32 %s109, 1
        %s282 = smul.addr %s281, 16
        %s283 = scalar_lea.vmem [#allocation2], %s282
        // Predicated region
        $region45: #{tpu_custom_call.1} parent=43 // pred_check
          %p284 = pneg %p122
        $region46: #{tpu_custom_call.1} parent=43 // pred_check_branch
          %286 = sbr.rel (%p284) target = $region48
        $region47: #{tpu_custom_call.1} parent=43 // pred_region
          %287 = dma.done %s280, 256
        $region48: #{tpu_custom_call.1} parent=43 // pred_fallthru
          _
        %s288 = smul.u32 2, %s23
        %p289 = scmp.lt.s32.totalorder %s288, 3
        %s290 = scalar_select %p289, %s288, 3
        %s291 = scalar_lea.vmem %s0, %s290
        %p292 = pneg %p44
        %p293 = pneg %p41
        %s294 = smul.u32 2, %s23
        %p295 = scmp.lt.s32.totalorder %s294, 3
        %s296 = scalar_select %p295, %s294, 3
        %s297 = scalar_lea.vmem %s1, %s296
        %p298 = pneg %p70
        %p299 = pneg %p67
        %s300 = smul.u32 2, %s23
        %p301 = scmp.lt.s32.totalorder %s300, 3
        %s302 = scalar_select %p301, %s300, 3
        %s303 = smul.addr %s302, 8
        %s304 = scalar_lea.vmem %s2, %s303
        %p305 = pneg %p96
        %p306 = pneg %p93
        %s307 = sand.u32 %s109, 1
        %s308 = scalar_lea.sflag [#allocation3], %s307
        %s309 = sand.u32 %s109, 1
        %s310 = smul.addr %s309, 16
        %s311 = scalar_lea.vmem [#allocation2], %s310
        %p312 = pneg %p122
        %p313 = pneg %p119
        %p314 = pneg %p143
        %p315 = pneg %p140
        %s316 = smul.u32 2, %s23
        %p317 = scmp.lt.s32.totalorder %s316, 3
        %s318 = scalar_select %p317, %s316, 3
        %s319 = smul.addr %s318, 8
        %s320 = scalar_lea.vmem %s5, %s319
        %p321 = pneg %p169
        %p322 = pneg %p166
        %p323 = pneg %p195
        %p324 = pneg %p192
        %s325 = sand.u32 %s182, 1
        %s326 = scalar_lea.sflag [#allocation4], %s325
        %s327 = sand.u32 %s182, 1
        %s328 = smul.addr %s327, 2
        %s329 = scalar_lea.vmem [#allocation5], %s328
        %s330 = smul.u32 2, %s23
        %p331 = scmp.lt.s32.totalorder %s330, 3
        %s332 = scalar_select %p331, %s330, 3
        %s333 = scalar_lea.vmem %s0, %s332
        %s334 = smul.u32 2, %s23
        %s335 = smul.u32 2, %s23
        %p336 = scmp.lt.s32.totalorder %s335, 3
        %s337 = scalar_select %p336, %s335, 3
        %s338 = scalar_lea.vmem %s1, %s337
        %s339 = smul.u32 2, %s23
        %s340 = smul.u32 2, %s23
        %p341 = scmp.lt.s32.totalorder %s340, 3
        %s342 = scalar_select %p341, %s340, 3
        %s343 = smul.addr %s342, 8
        %s344 = scalar_lea.vmem %s2, %s343
        %s345 = smul.u32 2, %s23
        %s346 = smul.u32 2, %s23
        %s347 = smul.u32 2, %s23
        %p348 = scmp.lt.s32.totalorder %s347, 3
        %s349 = scalar_select %p348, %s347, 3
        %s350 = smul.addr %s349, 8
        %s351 = scalar_lea.vmem %s5, %s350
        %s352 = smul.u32 2, %s23
        %v354 = vld [vmem:[%s333] sm:$0x1]
        %v355 = vld [vmem:[%s333 + $0x1] sm:$0x1]
        %v356 = vld [vmem:[%s338] sm:$0x1]
        %v357 = vld [vmem:[%s338 + $0x1] sm:$0x1]
        %v358 = vld [vmem:[%s344] sm:$0xff]
        %v359 = vld [vmem:[%s344 + $0x8] sm:$0xff]
        %v360 = vld [vmem:[%s283] sm:$0xff]
        %v361 = vld [vmem:[%s283 + $0x8] sm:$0xff]
        %v364 = vlaneseq
        %v365 = vshrl.u32 %v364, 7
        %v366 = vsub.s32 0, %v365
        %v367 = vrot.slane %v354, %v366
        %v368 = vlaneseq
        %v369 = vshrl.u32 %v368, 7
        %v370 = vsub.s32 0, %v369
        %v371 = vrot.slane %v355, %v370
        %372 = vset.pattern.permute.xlu0 0
        %373 = vperm.xlu0 %372, %v367
        %v374 = vpop.permute.xlu0 %373
        %376 = vset.pattern.permute.xlu0 0
        %377 = vperm.xlu0 %376, %v371
        %v378 = vpop.permute.xlu0 %377
        %v380 = vmul.f32 %v374, %v358
        %v381 = vmul.f32 %v378, %v359
        %v384 = vlaneseq
        %v385 = vshrl.u32 %v384, 7
        %v386 = vsub.s32 0, %v385
        %v387 = vrot.slane %v356, %v386
        %v388 = vlaneseq
        %v389 = vshrl.u32 %v388, 7
        %v390 = vsub.s32 0, %v389
        %v391 = vrot.slane %v357, %v390
        %392 = vset.pattern.permute.xlu0 0
        %393 = vperm.xlu0 %392, %v387
        %v394 = vpop.permute.xlu0 %393
        %396 = vset.pattern.permute.xlu0 0
        %397 = vperm.xlu0 %396, %v391
        %v398 = vpop.permute.xlu0 %397
        %v400 = vmul.f32 %v394, %v360
        %v401 = vmul.f32 %v398, %v361
        %v402 = vadd.f32 %v380, %v400
        %v403 = vadd.f32 %v381, %v401
        %v404 = vmul.f32 %v374, %v360
        %v405 = vmul.f32 %v378, %v361
        %v406 = vmul.f32 %v394, %v358
        %v407 = vmul.f32 %v398, %v359
        %v408 = vsub.f32 %v404, %v406
        %v409 = vsub.f32 %v405, %v407
        %v410 = vld [vmem:[%s4] sm:$0xff]
        %v411 = vpack.c.bf16 %v410, %v410
        %v412 = vpack.c.bf16 %v402, %v402
        %v413 = vpack.c.bf16 %v403, %v403
        %v414 = vld [vmem:[%s351] sm:$0xff]
        %v415 = vld [vmem:[%s351 + $0x8] sm:$0xff]
        %417 = vset.pattern.permute.xlu0 0
        %418 = vperm.xlu0 %417, %v414
        %v419 = vpop.permute.xlu0 %418
        %422 = vset.pattern.permute.xlu0 0
        %423 = vperm.xlu0 %422, %v415
        %v424 = vpop.permute.xlu0 %423
        %vm426 = vcmask 64512
        %v428 = vsel %vm426, %v411, 0
        %vm430 = vcmask 1043456
        %v432 = vsel %vm430, %v412, 0
        %434 = vmatprep.subr.bf16.mxu0 0
        %435 = vmatpush1.bf16.msra.mxu0 %v432
        %436 = vmatprep.subr.bf16.mxu0 0
        %437 = vmatpush1.bf16.msra.mxu0 0
        %438 = vmatprep.subr.bf16.mxu0 0
        %439 = vmatpush1.bf16.msra.mxu0 0
        %440 = vmatprep.subr.bf16.mxu0 0
        %441 = vmatpush1.bf16.msra.mxu0 0
        %442 = vmatprep.subr.bf16.mxu0 0
        %443 = vmatpush1.bf16.msra.mxu0 0
        %444 = vmatprep.subr.bf16.mxu0 0
        %445 = vmatpush1.bf16.msra.mxu0 0
        %446 = vmatprep.subr.bf16.mxu0 0
        %447 = vmatpush1.bf16.msra.mxu0 0
        %448 = vmatprep.subr.bf16.mxu0 0
        %449 = vmatpush1.bf16.msra.mxu0 0
        %450 = vmatprep.subr.bf16.mxu0 0
        %451 = vmatpush1.bf16.msra.mxu0 0
        %452 = vmatprep.subr.bf16.mxu0 0
        %453 = vmatpush1.bf16.msra.mxu0 0
        %454 = vmatprep.subr.bf16.mxu0 0
        %455 = vmatpush1.bf16.msra.mxu0 0
        %456 = vmatprep.subr.bf16.mxu0 0
        %457 = vmatpush1.bf16.msra.mxu0 0
        %458 = vmatprep.subr.bf16.mxu0 0
        %459 = vmatpush1.bf16.msra.mxu0 0
        %460 = vmatprep.subr.bf16.mxu0 0
        %461 = vmatpush1.bf16.msra.mxu0 0
        %462 = vmatprep.subr.bf16.mxu0 0
        %463 = vmatpush1.bf16.msra.mxu0 0
        %464 = vmatprep.subr.bf16.mxu0 0
        %465 = vmatpush1.bf16.msra.mxu0 0
        %466 = vmatprep.mubr.bf16.mxu0 0
        %467 = vmatmul.mubr.bf16.gmra.mrb[0].mxu0 %v428
        %v468 = vpop.f32.mrb[0].mxu0
        %v469 = vadd.f32 %v419, %v468
        %v470 = vpop.f32.mrb[0].mxu0
        %v471 = vpop.f32.mrb[0].mxu0
        %v472 = vpop.f32.mrb[0].mxu0
        %473 = vdwg.mxu0
        %v475 = vsel %vm430, %v413, 0
        %477 = vmatprep.subr.bf16.mxu0 0
        %478 = vmatpush1.bf16.msra.mxu0 %v475
        %479 = vmatprep.subr.bf16.mxu0 0
        %480 = vmatpush1.bf16.msra.mxu0 0
        %481 = vmatprep.subr.bf16.mxu0 0
        %482 = vmatpush1.bf16.msra.mxu0 0
        %483 = vmatprep.subr.bf16.mxu0 0
        %484 = vmatpush1.bf16.msra.mxu0 0
        %485 = vmatprep.subr.bf16.mxu0 0
        %486 = vmatpush1.bf16.msra.mxu0 0
        %487 = vmatprep.subr.bf16.mxu0 0
        %488 = vmatpush1.bf16.msra.mxu0 0
        %489 = vmatprep.subr.bf16.mxu0 0
        %490 = vmatpush1.bf16.msra.mxu0 0
        %491 = vmatprep.subr.bf16.mxu0 0
        %492 = vmatpush1.bf16.msra.mxu0 0
        %493 = vmatprep.subr.bf16.mxu0 0
        %494 = vmatpush1.bf16.msra.mxu0 0
        %495 = vmatprep.subr.bf16.mxu0 0
        %496 = vmatpush1.bf16.msra.mxu0 0
        %497 = vmatprep.subr.bf16.mxu0 0
        %498 = vmatpush1.bf16.msra.mxu0 0
        %499 = vmatprep.subr.bf16.mxu0 0
        %500 = vmatpush1.bf16.msra.mxu0 0
        %501 = vmatprep.subr.bf16.mxu0 0
        %502 = vmatpush1.bf16.msra.mxu0 0
        %503 = vmatprep.subr.bf16.mxu0 0
        %504 = vmatpush1.bf16.msra.mxu0 0
        %505 = vmatprep.subr.bf16.mxu0 0
        %506 = vmatpush1.bf16.msra.mxu0 0
        %507 = vmatprep.subr.bf16.mxu0 0
        %508 = vmatpush1.bf16.msra.mxu0 0
        %509 = vmatprep.mubr.bf16.mxu0 0
        %510 = vmatmul.mubr.bf16.gmra.mrb[0].mxu0 %v428
        %v511 = vpop.f32.mrb[0].mxu0
        %v512 = vadd.f32 %v424, %v511
        %v513 = vpop.f32.mrb[0].mxu0
        %v514 = vpop.f32.mrb[0].mxu0
        %v515 = vpop.f32.mrb[0].mxu0
        %516 = vdwg.mxu0
        %v517 = vsub.f32 %v469, %v408
        %v518 = vsub.f32 %v512, %v409
        %v519 = vmul.f32 %v517, %v517
        %v520 = vmul.f32 %v518, %v518
        %v521 = vrot.slane %v519, 4
        %v522 = vadd.f32 %v519, %v521
        %v523 = vrot.slane %v522, 2
        %v524 = vadd.f32 %v522, %v523
        %v525 = vrot.slane %v524, 1
        %v526 = vadd.f32 %v524, %v525
        %v527 = vrot.slane %v520, 4
        %v528 = vadd.f32 %v520, %v527
        %v529 = vrot.slane %v528, 2
        %v530 = vadd.f32 %v528, %v529
        %v531 = vrot.slane %v530, 1
        %v532 = vadd.f32 %v530, %v531
        %vm535 = vcmask 1041409
        %v536 = vsel %vm535, %v532, %v526
        %538 = vst [vmem:[%s329] sm:$0x3] %v536
        %s539 = sand.u32 %s182, 1
        %s540 = scalar_lea.sflag [#allocation4], %s539
        %s541 = sand.u32 %s182, 1
        %s542 = smul.addr %s541, 2
        %s543 = scalar_lea.vmem [#allocation5], %s542
        // Predicated region
        $region49: #{tpu_custom_call.1} parent=43 // pred_check
          %p544 = pneg %p192
        $region50: #{tpu_custom_call.1} parent=43 // pred_check_branch
          %546 = sbr.rel (%p544) target = $region52
        $region51: #{tpu_custom_call.1} parent=43 // pred_region
          %s548 = ssub.s32 32, 32
          %549 = vsyncadd %s540, %s548
          %s550 = smul.addr %s23, 32
          %s551 = scalar_lea.hbm %s6, %s550
          %s553 = sshll.u32 %s543, 4
          %s554 = int_to_ptr.vmem [resolvable:$true] %s553
          %556 = dma.vmem_to_hbm [thread:$0]  %s554, 32, %s551, %s540
        $region52: #{tpu_custom_call.1} parent=43 // pred_fallthru
          _
      $region44: #{tpu_custom_call.1} parent=5 // pred_fallthru
        _
      %p557 = scmp.le.s32.totalorder 2, %s18
      // Predicated region
      $region53: #{tpu_custom_call.1} parent=5 // pred_check
        %p558 = pneg %p557
      $region54: #{tpu_custom_call.1} parent=5 // pred_check_branch
        %560 = sbr.rel (%p558) target = $region56
      $region55: #{tpu_custom_call.1} parent=5 // pred_region
        %s561 = ssub.s32 %s18, 2
        // Predicated region
        $region57: #{tpu_custom_call.1} parent=55 // pred_check
          %p562 = pneg %p198
        $region58: #{tpu_custom_call.1} parent=55 // pred_check_branch
          %564 = sbr.rel (%p562) target = $region60
        $region59: #{tpu_custom_call.1} parent=55 // pred_region
          %s565 = sand.u32 %s183, 1
          %s566 = scalar_lea.sflag [#allocation4], %s565
          %s567 = sand.u32 %s183, 1
          %s568 = smul.addr %s567, 2
          %s569 = scalar_lea.vmem [#allocation5], %s568
          %570 = dma.done %s566, 32
        $region60: #{tpu_custom_call.1} parent=55 // pred_fallthru
          _
      $region56: #{tpu_custom_call.1} parent=5 // pred_fallthru
        _
    $region6: #{tpu_custom_call.1} parent=1 // loop_footer
      %s22 = sadd.s32 1, %s18
    $region7: #{tpu_custom_call.1} parent=1 // loop_footer_branch
      %17 = sbr.rel target = $region3
    $region8: #{tpu_custom_call.1} parent=1 // loop_exit
      _
    %571 = vsyncpa [#allocation3], 1
    %s572 = scalar_lea.sflag [#allocation3], 1
    %573 = vsyncpa %s572, 1
    %574 = vsyncpa [#allocation4], 1
    %s575 = scalar_lea.sflag [#allocation4], 1
    %576 = vsyncpa %s575, 1

</llo_original>
